<compile_context>
chip_gen: v6e
topology: v6e:2x2x1
jax: 0.10.0
libtpu: 0.0.40
codegen_flags: <defaults>
</compile_context>

<pallas_src>
import jax
import jax.numpy as jnp
from jax import lax
from jax.experimental import pallas as pl
from jax.experimental.pallas import tpu as pltpu

LANE = 128   # TPU lane width  (last dim)
SUB = 8      # TPU sublane width (second-to-last dim)


def _round_up(v, m):
    return (v + m - 1) // m * m


def _pad2(a, rows, cols):
    """Zero-pad a 2-D array up to (rows, cols)."""
    out = jnp.zeros((rows, cols), a.dtype)
    return out.at[: a.shape[0], : a.shape[1]].set(a)


# ---------------------------------------------------------------------------
# Fused Pallas kernel: GraphSage x2 + post_mp
# ---------------------------------------------------------------------------
def fused_gnn_stack_kernel(x_ref, adj_ref,
                           w0_ref, b0_ref, w1_ref, b1_ref,
                           wp1_ref, bp1_ref, wp2_ref, bp2_ref,
                           o_ref):
    adj = adj_ref[...]              # [Np, Np]  bf16, row-normalized (mean agg)
    x = x_ref[...]                  # [Np, F0p] f32

    def sage_layer(x_in, w_ref, b_ref):
        # Mean aggregation over incoming edges: bf16 operands, f32 MXU accumulate.
        prop = jnp.dot(adj, x_in.astype(jnp.bfloat16),
                       preferred_element_type=jnp.float32)
        # Merged projection: [x | prop] @ [Wl ; Wr] + (bl + br)   (one MXU call)
        xcat = jnp.concatenate([x_in, prop], axis=-1)
        h = jnp.dot(xcat, w_ref[...], preferred_element_type=jnp.float32) + b_ref[...]
        # F.normalize(h, p=2, dim=1), eps=1e-12: h * rsqrt(max(sum(h^2), eps^2))
        ss = jnp.sum(h * h, axis=-1, keepdims=True)
        h = h * lax.rsqrt(jnp.maximum(ss, 1e-24))
        return jnp.maximum(h, 0.0)  # ReLU  (dropout -> identity at inference)

    x1 = sage_layer(x, w0_ref, b0_ref)
    x2 = sage_layer(x1, w1_ref, b1_ref)

    # post_mp: Linear -> [Dropout=identity] -> Linear
    h = jnp.dot(x2, wp1_ref[...], preferred_element_type=jnp.float32) + bp1_ref[...]
    o_ref[...] = jnp.dot(h, wp2_ref[...], preferred_element_type=jnp.float32) + bp2_ref[...]


_VMEM_SPEC = pl.BlockSpec(memory_space=pltpu.MemorySpace.VMEM)


# ---------------------------------------------------------------------------
# Glue: adjacency construction, parameter prep (merge + pad), forward pass
# ---------------------------------------------------------------------------
def build_mean_adjacency(edge_index, num_nodes):
    """Dense row-normalized adjacency: A[i, j] = 1/deg(i) for edge j -> i (mean reduce)."""
    src = edge_index[0]
    dst = edge_index[1]
    a = jnp.zeros((num_nodes, num_nodes), jnp.float32)
    a = a.at[dst, src].add(1.0)
    deg = jnp.sum(a, axis=1, keepdims=True)
    return a / jnp.maximum(deg, 1.0)


def init_linear(key, in_dim, out_dim):
    """Deterministic stand-in for nn.Linear init. Returns W transposed to [in, out]."""
    kw, kb = jax.random.split(key)
    bound = 1.0 / jnp.sqrt(jnp.float32(in_dim))
    w = jax.random.uniform(kw, (out_dim, in_dim), jnp.float32, -bound, bound)  # torch layout
    b = jax.random.uniform(kb, (1, out_dim), jnp.float32, -bound, bound)
    return w.T, b   # kernel computes x @ W(in,out) == x @ W_torch^T


def _merged_sage_weights(wl, bl, wr, br, in_pad, out_pad):
    """Stack [Wl ; Wr] on the (padded) contraction axis and sum biases, zero-padded."""
    w = jnp.concatenate([_pad2(wl, in_pad, out_pad), _pad2(wr, in_pad, out_pad)], axis=0)
    b = _pad2(bl + br, 1, out_pad)
    return w, b


def gnn_stack_forward(x, edge_index, params):
    n, f0 = x.shape
    h = params["convs"][0]["wl"].shape[1]
    o = params["w2"].shape[1]

    n_p = _round_up(n, SUB)
    f0_p = _round_up(f0, LANE)
    h_p = _round_up(h, LANE)
    o_p = _round_up(o, LANE)

    # Adjacency in bf16 (halves HBM bytes of the largest operand); padded rows/cols
    # are all-zero so they contribute nothing to real rows.
    adj = _pad2(build_mean_adjacency(edge_index, n), n_p, n_p).astype(jnp.bfloat16)
    x_p = _pad2(x, n_p, f0_p)

    c0, c1 = params["convs"]
    w0, b0 = _merged_sage_weights(c0["wl"], c0["bl"], c0["wr"], c0["br"], f0_p, h_p)
    w1, b1 = _merged_sage_weights(c1["wl"], c1["bl"], c1["wr"], c1["br"], h_p, h_p)
    wp1 = _pad2(params["w1"], h_p, h_p)
    bp1 = _pad2(params["b1"], 1, h_p)
    wp2 = _pad2(params["w2"], h_p, o_p)
    bp2 = _pad2(params["b2"], 1, o_p)

    out = pl.pallas_call(
        fused_gnn_stack_kernel,
        out_shape=jax.ShapeDtypeStruct((n_p, o_p), jnp.float32),
        in_specs=[_VMEM_SPEC] * 10,
        out_specs=_VMEM_SPEC,
        compiler_params=pltpu.CompilerParams(vmem_limit_bytes=32 * 1024 * 1024),
    )(x_p, adj, w0, b0, w1, b1, wp1, bp1, wp2, bp2)

    # Strip padding (emb=True -> return embeddings directly).
    return out[:n, :o]


# ---------------------------------------------------------------------------
if __name__ == "__main__":
    input_dim, hidden_dim, output_dim = 16, 32, 8
    num_nodes = 16

    root = jax.random.PRNGKey(0)
    k_x, k0l, k0r, k1l, k1r, kp1, kp2 = jax.random.split(root, 7)

    # Node features X: [N, input_dim]
    X = jax.random.normal(k_x, (num_nodes, input_dim), jnp.float32)

    # Edge index E: [2, E]  (row0 = source j, row1 = target i), deterministic ring + skip
    src = jnp.concatenate([jnp.arange(num_nodes), jnp.arange(num_nodes)])
    dst = jnp.concatenate([(jnp.arange(num_nodes) + 1) % num_nodes,
                           (jnp.arange(num_nodes) + 2) % num_nodes])
    E = jnp.stack([src, dst]).astype(jnp.int32)

    # GraphSage layer 0: in=input_dim, out=hidden_dim ; layer 1: in=hidden_dim, out=hidden_dim
    wl0, bl0 = init_linear(k0l, input_dim, hidden_dim)
    wr0, br0 = init_linear(k0r, input_dim, hidden_dim)
    wl1, bl1 = init_linear(k1l, hidden_dim, hidden_dim)
    wr1, br1 = init_linear(k1r, hidden_dim, hidden_dim)
    # post_mp: Linear(hidden, hidden) -> Linear(hidden, output)
    w1, b1 = init_linear(kp1, hidden_dim, hidden_dim)
    w2, b2 = init_linear(kp2, hidden_dim, output_dim)

    params = {
        "convs": [
            {"wl": wl0, "bl": bl0, "wr": wr0, "br": br0},
            {"wl": wl1, "bl": bl1, "wr": wr1, "br": br1},
        ],
        "w1": w1, "b1": b1, "w2": w2, "b2": b2,
    }

    out = gnn_stack_forward(X, E, params)
    out = jax.block_until_ready(out)
    assert out.shape == (num_nodes, output_dim), out.shape
    assert bool(jnp.all(jnp.isfinite(out)))
    print("KERNEL_OK")
</pallas_src>

<mosaic_0001>
module attributes {stable_mosaic.version = 11 : i64} {
  func.func @fused_gnn_stack_kernel(%arg0: memref<16x128xf32, #tpu.memory_space<vmem>>, %arg1: memref<16x16xbf16, #tpu.memory_space<vmem>>, %arg2: memref<256x128xf32, #tpu.memory_space<vmem>>, %arg3: memref<1x128xf32, #tpu.memory_space<vmem>>, %arg4: memref<256x128xf32, #tpu.memory_space<vmem>>, %arg5: memref<1x128xf32, #tpu.memory_space<vmem>>, %arg6: memref<128x128xf32, #tpu.memory_space<vmem>>, %arg7: memref<1x128xf32, #tpu.memory_space<vmem>>, %arg8: memref<128x128xf32, #tpu.memory_space<vmem>>, %arg9: memref<1x128xf32, #tpu.memory_space<vmem>>, %arg10: memref<16x128xf32, #tpu.memory_space<vmem>>) attributes {dimension_semantics = [], scalar_prefetch = 0 : i64, scratch_operands = 0 : i64, tpu.core_type = #tpu.core_type<tc>} {
    %c0 = arith.constant 0 : index
    %c0_0 = arith.constant 0 : index
    %0 = vector.load %arg1[%c0, %c0_0] : memref<16x16xbf16, #tpu.memory_space<vmem>>, vector<16x16xbf16>
    %c0_1 = arith.constant 0 : index
    %c0_2 = arith.constant 0 : index
    %1 = vector.load %arg0[%c0_1, %c0_2] : memref<16x128xf32, #tpu.memory_space<vmem>>, vector<16x128xf32>
    %2 = arith.truncf %1 : vector<16x128xf32> to vector<16x128xbf16>
    %cst = arith.constant dense<0.000000e+00> : vector<16x128xf32>
    %3 = tpu.matmul %0, %2, %cst {dimension_numbers = #tpu.dot_dimension_numbers<[1], [0], [0], [1], [0, 0, 1, 1], [], []>} : vector<16x16xbf16>, vector<16x128xbf16>, vector<16x128xf32> -> vector<16x128xf32>
    %4 = tpu.concatenate %1, %3 in 1 : vector<16x128xf32>, vector<16x128xf32> -> vector<16x256xf32>
    %c0_3 = arith.constant 0 : index
    %c0_4 = arith.constant 0 : index
    %5 = vector.load %arg2[%c0_3, %c0_4] : memref<256x128xf32, #tpu.memory_space<vmem>>, vector<256x128xf32>
    %cst_5 = arith.constant dense<0.000000e+00> : vector<16x128xf32>
    %6 = tpu.matmul %4, %5, %cst_5 {dimension_numbers = #tpu.dot_dimension_numbers<[1], [0], [0], [1], [0, 0, 1, 1], [], []>} : vector<16x256xf32>, vector<256x128xf32>, vector<16x128xf32> -> vector<16x128xf32>
    %c0_6 = arith.constant 0 : index
    %c0_7 = arith.constant 0 : index
    %7 = vector.load %arg3[%c0_6, %c0_7] : memref<1x128xf32, #tpu.memory_space<vmem>>, vector<1x128xf32>
    %8 = vector.broadcast %7 : vector<1x128xf32> to vector<16x128xf32>
    %9 = arith.addf %6, %8 : vector<16x128xf32>
    %10 = arith.mulf %9, %9 : vector<16x128xf32>
    %cst_8 = arith.constant dense<0.000000e+00> : vector<16xf32>
    %11 = vector.multi_reduction <add>, %10, %cst_8 [1] : vector<16x128xf32> to vector<16xf32>
    %12 = vector.shape_cast %11 : vector<16xf32> to vector<16x1xf32>
    %cst_9 = arith.constant 1.000000e-24 : f32
    %13 = vector.broadcast %cst_9 : f32 to vector<16x1xf32>
    %14 = arith.maximumf %12, %13 : vector<16x1xf32>
    %15 = math.rsqrt %14 : vector<16x1xf32>
    %16 = vector.broadcast %15 : vector<16x1xf32> to vector<16x128xf32>
    %17 = arith.mulf %9, %16 : vector<16x128xf32>
    %cst_10 = arith.constant 0.000000e+00 : f32
    %18 = vector.broadcast %cst_10 : f32 to vector<16x128xf32>
    %19 = arith.maximumf %17, %18 : vector<16x128xf32>
    %20 = arith.truncf %19 : vector<16x128xf32> to vector<16x128xbf16>
    %cst_11 = arith.constant dense<0.000000e+00> : vector<16x128xf32>
    %21 = tpu.matmul %0, %20, %cst_11 {dimension_numbers = #tpu.dot_dimension_numbers<[1], [0], [0], [1], [0, 0, 1, 1], [], []>} : vector<16x16xbf16>, vector<16x128xbf16>, vector<16x128xf32> -> vector<16x128xf32>
    %22 = tpu.concatenate %19, %21 in 1 : vector<16x128xf32>, vector<16x128xf32> -> vector<16x256xf32>
    %c0_12 = arith.constant 0 : index
    %c0_13 = arith.constant 0 : index
    %23 = vector.load %arg4[%c0_12, %c0_13] : memref<256x128xf32, #tpu.memory_space<vmem>>, vector<256x128xf32>
    %cst_14 = arith.constant dense<0.000000e+00> : vector<16x128xf32>
    %24 = tpu.matmul %22, %23, %cst_14 {dimension_numbers = #tpu.dot_dimension_numbers<[1], [0], [0], [1], [0, 0, 1, 1], [], []>} : vector<16x256xf32>, vector<256x128xf32>, vector<16x128xf32> -> vector<16x128xf32>
    %c0_15 = arith.constant 0 : index
    %c0_16 = arith.constant 0 : index
    %25 = vector.load %arg5[%c0_15, %c0_16] : memref<1x128xf32, #tpu.memory_space<vmem>>, vector<1x128xf32>
    %26 = vector.broadcast %25 : vector<1x128xf32> to vector<16x128xf32>
    %27 = arith.addf %24, %26 : vector<16x128xf32>
    %28 = arith.mulf %27, %27 : vector<16x128xf32>
    %cst_17 = arith.constant dense<0.000000e+00> : vector<16xf32>
    %29 = vector.multi_reduction <add>, %28, %cst_17 [1] : vector<16x128xf32> to vector<16xf32>
    %30 = vector.shape_cast %29 : vector<16xf32> to vector<16x1xf32>
    %cst_18 = arith.constant 1.000000e-24 : f32
    %31 = vector.broadcast %cst_18 : f32 to vector<16x1xf32>
    %32 = arith.maximumf %30, %31 : vector<16x1xf32>
    %33 = math.rsqrt %32 : vector<16x1xf32>
    %34 = vector.broadcast %33 : vector<16x1xf32> to vector<16x128xf32>
    %35 = arith.mulf %27, %34 : vector<16x128xf32>
    %cst_19 = arith.constant 0.000000e+00 : f32
    %36 = vector.broadcast %cst_19 : f32 to vector<16x128xf32>
    %37 = arith.maximumf %35, %36 : vector<16x128xf32>
    %c0_20 = arith.constant 0 : index
    %c0_21 = arith.constant 0 : index
    %38 = vector.load %arg6[%c0_20, %c0_21] : memref<128x128xf32, #tpu.memory_space<vmem>>, vector<128x128xf32>
    %cst_22 = arith.constant dense<0.000000e+00> : vector<16x128xf32>
    %39 = tpu.matmul %37, %38, %cst_22 {dimension_numbers = #tpu.dot_dimension_numbers<[1], [0], [0], [1], [0, 0, 1, 1], [], []>} : vector<16x128xf32>, vector<128x128xf32>, vector<16x128xf32> -> vector<16x128xf32>
    %c0_23 = arith.constant 0 : index
    %c0_24 = arith.constant 0 : index
    %40 = vector.load %arg7[%c0_23, %c0_24] : memref<1x128xf32, #tpu.memory_space<vmem>>, vector<1x128xf32>
    %41 = vector.broadcast %40 : vector<1x128xf32> to vector<16x128xf32>
    %42 = arith.addf %39, %41 : vector<16x128xf32>
    %c0_25 = arith.constant 0 : index
    %c0_26 = arith.constant 0 : index
    %43 = vector.load %arg8[%c0_25, %c0_26] : memref<128x128xf32, #tpu.memory_space<vmem>>, vector<128x128xf32>
    %cst_27 = arith.constant dense<0.000000e+00> : vector<16x128xf32>
    %44 = tpu.matmul %42, %43, %cst_27 {dimension_numbers = #tpu.dot_dimension_numbers<[1], [0], [0], [1], [0, 0, 1, 1], [], []>} : vector<16x128xf32>, vector<128x128xf32>, vector<16x128xf32> -> vector<16x128xf32>
    %c0_28 = arith.constant 0 : index
    %c0_29 = arith.constant 0 : index
    %45 = vector.load %arg9[%c0_28, %c0_29] : memref<1x128xf32, #tpu.memory_space<vmem>>, vector<1x128xf32>
    %46 = vector.broadcast %45 : vector<1x128xf32> to vector<16x128xf32>
    %47 = arith.addf %44, %46 : vector<16x128xf32>
    %c0_30 = arith.constant 0 : index
    %c0_31 = arith.constant 0 : index
    %48 = vector.load %arg10[%c0_30, %c0_31] : memref<16x128xf32, #tpu.memory_space<vmem>>, vector<16x128xf32>
    tpu.vector_store %arg10[%c0_30, %c0_31], %47 {strides = array<i32>} : memref<16x128xf32, #tpu.memory_space<vmem>>, vector<16x128xf32>,
    return
  }
}

</mosaic_0001>

<llo_original>
// kernel: tpu_custom_call.1
$region0: #{tpu_custom_call.1}
  #allocation0 [shape = 'u32[]', space=smem, size = 0x4, offset = 0x4, fixed_abs, tag = 'smem constant byte address 0x4 - core index']
  #allocation1 [shape = 'u32[144,128]{1,0:T(1,128)}', space=vmem, size = 0x12000, scoped, tag = 'internal scratch']
  %s0 = inlined_call_operand.hbm [shape: f32[16,128], index: 0, kind: input, shape index: {}]
  %s1 = inlined_call_operand.hbm [shape: bf16[16,16], index: 1, kind: input, shape index: {}]
  %s2 = inlined_call_operand.hbm [shape: f32[256,128], index: 2, kind: input, shape index: {}]
  %s3 = inlined_call_operand.vmem [shape: f32[1,128], index: 3, kind: input, shape index: {}]
  %s4 = inlined_call_operand.hbm [shape: f32[256,128], index: 4, kind: input, shape index: {}]
  %s5 = inlined_call_operand.vmem [shape: f32[1,128], index: 5, kind: input, shape index: {}]
  %s6 = inlined_call_operand.hbm [shape: f32[128,128], index: 6, kind: input, shape index: {}]
  %s7 = inlined_call_operand.vmem [shape: f32[1,128], index: 7, kind: input, shape index: {}]
  %s8 = inlined_call_operand.hbm [shape: f32[128,128], index: 8, kind: input, shape index: {}]
  %s9 = inlined_call_operand.vmem [shape: f32[1,128], index: 9, kind: input, shape index: {}]
  %s10 = inlined_call_operand.hbm [shape: f32[16,128], index: 10, kind: output, shape index: {}]
  %s11 = sld [smem:[#allocation0]]
  $region74: #{tpu_custom_call.1} parent=0
    _
  %s13 = ssub.s32 1, %s11
  %s14 = scalar_select 0, %s13, %s11
  $region1: #{tpu_custom_call.1} parent=0
    #allocation2 [shape = 'u8[8192]{0}', space=vmem, size = 0x2000, scoped, tag = 'input window, operand 0, single buffered']
    #allocation3 [shape = 's32[1]{0}', space=sflag, size = 0x4, scoped, tag = 'scoped memory for tpu_custom_call.1']
    #allocation4 [shape = 's32[1]{0}', space=sflag, size = 0x4, scoped, tag = 'scoped memory for tpu_custom_call.1']
    #allocation5 [shape = 'u8[4096]{0}', space=vmem, size = 0x1000, scoped, tag = 'input window, operand 1, single buffered']
    #allocation6 [shape = 's32[1]{0}', space=sflag, size = 0x4, scoped, tag = 'scoped memory for tpu_custom_call.1']
    #allocation7 [shape = 'u8[131072]{0}', space=vmem, size = 0x20000, scoped, tag = 'input window, operand 2, single buffered']
    #allocation8 [shape = 'u8[131072]{0}', space=vmem, size = 0x20000, scoped, tag = 'input window, operand 4, single buffered']
    #allocation9 [shape = 's32[1]{0}', space=sflag, size = 0x4, scoped, tag = 'scoped memory for tpu_custom_call.1']
    #allocation10 [shape = 'u8[65536]{0}', space=vmem, size = 0x10000, scoped, tag = 'input window, operand 6, single buffered']
    #allocation11 [shape = 'u8[65536]{0}', space=vmem, size = 0x10000, scoped, tag = 'input window, operand 8, single buffered']
    #allocation12 [shape = 's32[1]{0}', space=sflag, size = 0x4, scoped, tag = 'scoped memory for tpu_custom_call.1']
    #allocation13 [shape = 'u8[8192]{0}', space=vmem, size = 0x2000, scoped, tag = 'output window, operand 0, single buffered']
    %15 = vsyncpa [#allocation3], 0
    %16 = vsyncpa [#allocation6], 0
    %17 = vsyncpa [#allocation9], 0
    %18 = vsyncpa [#allocation12], 0
    %19 = vsyncpa [#allocation4], 0
    // Predicated region
    $region2: #{tpu_custom_call.1} parent=1 // pred_check
      _
    $region3: #{tpu_custom_call.1} parent=1 // pred_check_branch
      %21 = sbr.rel (0) target = $region5
    $region4: #{tpu_custom_call.1} parent=1 // pred_region
      %s23 = ssub.s32 256, 256
      %24 = vsyncadd [#allocation3], %s23
      %s25 = sshll.u32 [#allocation2], 4
      %s26 = int_to_ptr.vmem [resolvable:$true] %s25
      %31 = dma.hbm_to_vmem [thread:$0]  %s0, 256, %s26, [#allocation3], 128, 128, 8
    $region5: #{tpu_custom_call.1} parent=1 // pred_fallthru
      _
    // Predicated region
    $region6: #{tpu_custom_call.1} parent=1 // pred_check
      _
    $region7: #{tpu_custom_call.1} parent=1 // pred_check_branch
      %33 = sbr.rel (0) target = $region9
    $region8: #{tpu_custom_call.1} parent=1 // pred_region
      %s35 = ssub.s32 128, 128
      %36 = vsyncadd [#allocation6], %s35
      %s37 = sshll.u32 [#allocation5], 4
      %s38 = int_to_ptr.vmem [resolvable:$true] %s37
      %43 = dma.hbm_to_vmem [thread:$0]  %s1, 128, %s38, [#allocation6], 64, 64, 4
    $region9: #{tpu_custom_call.1} parent=1 // pred_fallthru
      _
    // Predicated region
    $region10: #{tpu_custom_call.1} parent=1 // pred_check
      _
    $region11: #{tpu_custom_call.1} parent=1 // pred_check_branch
      %45 = sbr.rel (0) target = $region13
    $region12: #{tpu_custom_call.1} parent=1 // pred_region
      %s47 = ssub.s32 4096, 4096
      %48 = vsyncadd [#allocation6], %s47
      %s49 = sshll.u32 [#allocation7], 4
      %s50 = int_to_ptr.vmem [resolvable:$true] %s49
      %55 = dma.hbm_to_vmem [thread:$0]  %s2, 4096, %s50, [#allocation6], 128, 128, 8
    $region13: #{tpu_custom_call.1} parent=1 // pred_fallthru
      _
    // Predicated region
    $region14: #{tpu_custom_call.1} parent=1 // pred_check
      _
    $region15: #{tpu_custom_call.1} parent=1 // pred_check_branch
      %57 = sbr.rel (0) target = $region17
    $region16: #{tpu_custom_call.1} parent=1 // pred_region
      _
    $region17: #{tpu_custom_call.1} parent=1 // pred_fallthru
      _
    // Predicated region
    $region18: #{tpu_custom_call.1} parent=1 // pred_check
      _
    $region19: #{tpu_custom_call.1} parent=1 // pred_check_branch
      %59 = sbr.rel (0) target = $region21
    $region20: #{tpu_custom_call.1} parent=1 // pred_region
      %s61 = ssub.s32 4096, 4096
      %62 = vsyncadd [#allocation9], %s61
      %s63 = sshll.u32 [#allocation8], 4
      %s64 = int_to_ptr.vmem [resolvable:$true] %s63
      %69 = dma.hbm_to_vmem [thread:$0]  %s4, 4096, %s64, [#allocation9], 128, 128, 8
    $region21: #{tpu_custom_call.1} parent=1 // pred_fallthru
      _
    // Predicated region
    $region22: #{tpu_custom_call.1} parent=1 // pred_check
      _
    $region23: #{tpu_custom_call.1} parent=1 // pred_check_branch
      %71 = sbr.rel (0) target = $region25
    $region24: #{tpu_custom_call.1} parent=1 // pred_region
      _
    $region25: #{tpu_custom_call.1} parent=1 // pred_fallthru
      _
    // Predicated region
    $region26: #{tpu_custom_call.1} parent=1 // pred_check
      _
    $region27: #{tpu_custom_call.1} parent=1 // pred_check_branch
      %73 = sbr.rel (0) target = $region29
    $region28: #{tpu_custom_call.1} parent=1 // pred_region
      %s75 = ssub.s32 2048, 2048
      %76 = vsyncadd [#allocation9], %s75
      %s77 = sshll.u32 [#allocation10], 4
      %s78 = int_to_ptr.vmem [resolvable:$true] %s77
      %83 = dma.hbm_to_vmem [thread:$0]  %s6, 2048, %s78, [#allocation9], 128, 128, 8
    $region29: #{tpu_custom_call.1} parent=1 // pred_fallthru
      _
    // Predicated region
    $region30: #{tpu_custom_call.1} parent=1 // pred_check
      _
    $region31: #{tpu_custom_call.1} parent=1 // pred_check_branch
      %85 = sbr.rel (0) target = $region33
    $region32: #{tpu_custom_call.1} parent=1 // pred_region
      _
    $region33: #{tpu_custom_call.1} parent=1 // pred_fallthru
      _
    // Predicated region
    $region34: #{tpu_custom_call.1} parent=1 // pred_check
      _
    $region35: #{tpu_custom_call.1} parent=1 // pred_check_branch
      %87 = sbr.rel (0) target = $region37
    $region36: #{tpu_custom_call.1} parent=1 // pred_region
      %s89 = ssub.s32 2048, 2048
      %90 = vsyncadd [#allocation12], %s89
      %s91 = sshll.u32 [#allocation11], 4
      %s92 = int_to_ptr.vmem [resolvable:$true] %s91
      %97 = dma.hbm_to_vmem [thread:$0]  %s8, 2048, %s92, [#allocation12], 128, 128, 8
    $region37: #{tpu_custom_call.1} parent=1 // pred_fallthru
      _
    // Predicated region
    $region38: #{tpu_custom_call.1} parent=1 // pred_check
      _
    $region39: #{tpu_custom_call.1} parent=1 // pred_check_branch
      %99 = sbr.rel (0) target = $region41
    $region40: #{tpu_custom_call.1} parent=1 // pred_region
      _
    $region41: #{tpu_custom_call.1} parent=1 // pred_fallthru
      _
    // Predicated region
    $region42: #{tpu_custom_call.1} parent=1 // pred_check
      _
    $region43: #{tpu_custom_call.1} parent=1 // pred_check_branch
      %101 = sbr.rel (0) target = $region45
    $region44: #{tpu_custom_call.1} parent=1 // pred_region
      %102 = dma.done [#allocation3], 256
    $region45: #{tpu_custom_call.1} parent=1 // pred_fallthru
      _
    // Predicated region
    $region46: #{tpu_custom_call.1} parent=1 // pred_check
      _
    $region47: #{tpu_custom_call.1} parent=1 // pred_check_branch
      %104 = sbr.rel (0) target = $region49
    $region48: #{tpu_custom_call.1} parent=1 // pred_region
      %105 = dma.done [#allocation6], 128
    $region49: #{tpu_custom_call.1} parent=1 // pred_fallthru
      _
    // Predicated region
    $region50: #{tpu_custom_call.1} parent=1 // pred_check
      _
    $region51: #{tpu_custom_call.1} parent=1 // pred_check_branch
      %107 = sbr.rel (0) target = $region53
    $region52: #{tpu_custom_call.1} parent=1 // pred_region
      %108 = dma.done [#allocation6], 4096
    $region53: #{tpu_custom_call.1} parent=1 // pred_fallthru
      _
    // Predicated region
    $region54: #{tpu_custom_call.1} parent=1 // pred_check
      _
    $region55: #{tpu_custom_call.1} parent=1 // pred_check_branch
      %110 = sbr.rel (0) target = $region57
    $region56: #{tpu_custom_call.1} parent=1 // pred_region
      %111 = dma.done [#allocation9], 4096
    $region57: #{tpu_custom_call.1} parent=1 // pred_fallthru
      _
    // Predicated region
    $region58: #{tpu_custom_call.1} parent=1 // pred_check
      _
    $region59: #{tpu_custom_call.1} parent=1 // pred_check_branch
      %113 = sbr.rel (0) target = $region61
    $region60: #{tpu_custom_call.1} parent=1 // pred_region
      %114 = dma.done [#allocation9], 2048
    $region61: #{tpu_custom_call.1} parent=1 // pred_fallthru
      _
    // Predicated region
    $region62: #{tpu_custom_call.1} parent=1 // pred_check
      _
    $region63: #{tpu_custom_call.1} parent=1 // pred_check_branch
      %116 = sbr.rel (0) target = $region65
    $region64: #{tpu_custom_call.1} parent=1 // pred_region
      %117 = dma.done [#allocation12], 2048
    $region65: #{tpu_custom_call.1} parent=1 // pred_fallthru
      _
    %v119 = vld [vmem:[#allocation5] sm:$0xf]
    %v120 = vld [vmem:[#allocation5 + $0x4] sm:$0xf]
    %v121 = vld [vmem:[#allocation2] sm:$0xff]
    %v122 = vld [vmem:[#allocation2 + $0x8] sm:$0xff]
    %v123 = vpack.c.bf16 %v122, %v121
    %v126 = vunpack.c.l.b16 %v119
    %v127 = vunpack.c.l.b16 %v120
    %v128 = vpack.c.b16 %v127, %v126
    %vm129 = vcmask 130048
    %v131 = vsel %vm129, %v128, 0
    %133 = vmatprep.subr.bf16.mxu0 0
    %134 = vmatpush1.bf16.msra.mxu0 0
    %135 = vmatprep.subr.bf16.mxu0 0
    %136 = vmatpush1.bf16.msra.mxu0 0
    %137 = vmatprep.subr.bf16.mxu0 0
    %138 = vmatpush1.bf16.msra.mxu0 0
    %139 = vmatprep.subr.bf16.mxu0 0
    %140 = vmatpush1.bf16.msra.mxu0 0
    %141 = vmatprep.subr.bf16.mxu0 0
    %142 = vmatpush1.bf16.msra.mxu0 0
    %143 = vmatprep.subr.bf16.mxu0 0
    %144 = vmatpush1.bf16.msra.mxu0 0
    %145 = vmatprep.subr.bf16.mxu0 0
    %146 = vmatpush1.bf16.msra.mxu0 0
    %147 = vmatprep.subr.bf16.mxu0 0
    %148 = vmatpush1.bf16.msra.mxu0 %v123
    %149 = vmatprep.subr.bf16.mxu0 0
    %150 = vmatpush2.bf16.msra.mxu0 0
    %151 = vmatprep.subr.bf16.mxu0 0
    %152 = vmatpush2.bf16.msra.mxu0 0
    %153 = vmatprep.subr.bf16.mxu0 0
    %154 = vmatpush2.bf16.msra.mxu0 0
    %155 = vmatprep.subr.bf16.mxu0 0
    %156 = vmatpush2.bf16.msra.mxu0 0
    %157 = vmatprep.subr.bf16.mxu0 0
    %158 = vmatpush2.bf16.msra.mxu0 0
    %159 = vmatprep.subr.bf16.mxu0 0
    %160 = vmatpush2.bf16.msra.mxu0 0
    %161 = vmatprep.subr.bf16.mxu0 0
    %162 = vmatpush2.bf16.msra.mxu0 0
    %163 = vmatprep.subr.bf16.mxu0 0
    %164 = vmatpush2.bf16.msra.mxu0 0
    %165 = vmatprep.mubr.bf16.mxu0 0
    %166 = vmatmul.mubr.bf16.gmra.mxu0 %v131
    %v167 = vpop.f32.mrf.mxu0
    %v168 = vadd.f32 0.0, %v167
    %v169 = vpop.f32.mrf.mxu0
    %v170 = vpop.f32.mrf.mxu0
    %v171 = vadd.f32 0.0, %v170
    %v172 = vpop.f32.mrf.mxu0
    %173 = vdwg.mxu0
    %v174 = vld [vmem:[#allocation7] sm:$0xff]
    %v175 = vld [vmem:[#allocation7 + $0x8] sm:$0xff]
    %v176 = vld [vmem:[#allocation7 + $0x10] sm:$0xff]
    %v177 = vld [vmem:[#allocation7 + $0x18] sm:$0xff]
    %v178 = vld [vmem:[#allocation7 + $0x20] sm:$0xff]
    %v179 = vld [vmem:[#allocation7 + $0x28] sm:$0xff]
    %v180 = vld [vmem:[#allocation7 + $0x30] sm:$0xff]
    %v181 = vld [vmem:[#allocation7 + $0x38] sm:$0xff]
    %v182 = vld [vmem:[#allocation7 + $0x40] sm:$0xff]
    %v183 = vld [vmem:[#allocation7 + $0x48] sm:$0xff]
    %v184 = vld [vmem:[#allocation7 + $0x50] sm:$0xff]
    %v185 = vld [vmem:[#allocation7 + $0x58] sm:$0xff]
    %v186 = vld [vmem:[#allocation7 + $0x60] sm:$0xff]
    %v187 = vld [vmem:[#allocation7 + $0x68] sm:$0xff]
    %v188 = vld [vmem:[#allocation7 + $0x70] sm:$0xff]
    %v189 = vld [vmem:[#allocation7 + $0x78] sm:$0xff]
    %v190 = vld [vmem:[#allocation7 + $0x80] sm:$0xff]
    %v191 = vld [vmem:[#allocation7 + $0x88] sm:$0xff]
    %v192 = vld [vmem:[#allocation7 + $0x90] sm:$0xff]
    %v193 = vld [vmem:[#allocation7 + $0x98] sm:$0xff]
    %v194 = vld [vmem:[#allocation7 + $0xa0] sm:$0xff]
    %v195 = vld [vmem:[#allocation7 + $0xa8] sm:$0xff]
    %v196 = vld [vmem:[#allocation7 + $0xb0] sm:$0xff]
    %v197 = vld [vmem:[#allocation7 + $0xb8] sm:$0xff]
    %v198 = vld [vmem:[#allocation7 + $0xc0] sm:$0xff]
    %v199 = vld [vmem:[#allocation7 + $0xc8] sm:$0xff]
    %v200 = vld [vmem:[#allocation7 + $0xd0] sm:$0xff]
    %v201 = vld [vmem:[#allocation7 + $0xd8] sm:$0xff]
    %v202 = vld [vmem:[#allocation7 + $0xe0] sm:$0xff]
    %v203 = vld [vmem:[#allocation7 + $0xe8] sm:$0xff]
    %v204 = vld [vmem:[#allocation7 + $0xf0] sm:$0xff]
    %v205 = vld [vmem:[#allocation7 + $0xf8] sm:$0xff]
    %v206 = vld [vmem:[%s3] sm:$0x1]
    %v208 = vlaneseq
    %v209 = vshrl.u32 %v208, 7
    %v210 = vsub.s32 0, %v209
    %v211 = vrot.slane %v206, %v210
    %213 = vmatprep.subr.mxu0 0.0
    %214 = vmatpush1.msra.mxu0 %v189
    %215 = vmatprep.subr.mxu0 0.0
    %216 = vmatpush1.msra.mxu0 %v188
    %217 = vmatprep.subr.mxu0 0.0
    %218 = vmatpush1.msra.mxu0 %v187
    %219 = vmatprep.subr.mxu0 0.0
    %220 = vmatpush1.msra.mxu0 %v186
    %221 = vmatprep.subr.mxu0 0.0
    %222 = vmatpush1.msra.mxu0 %v185
    %223 = vmatprep.subr.mxu0 0.0
    %224 = vmatpush1.msra.mxu0 %v184
    %225 = vmatprep.subr.mxu0 0.0
    %226 = vmatpush1.msra.mxu0 %v183
    %227 = vmatprep.subr.mxu0 0.0
    %228 = vmatpush1.msra.mxu0 %v182
    %229 = vmatprep.subr.mxu0 0.0
    %230 = vmatpush1.msra.mxu0 %v181
    %231 = vmatprep.subr.mxu0 0.0
    %232 = vmatpush1.msra.mxu0 %v180
    %233 = vmatprep.subr.mxu0 0.0
    %234 = vmatpush1.msra.mxu0 %v179
    %235 = vmatprep.subr.mxu0 0.0
    %236 = vmatpush1.msra.mxu0 %v178
    %237 = vmatprep.subr.mxu0 0.0
    %238 = vmatpush1.msra.mxu0 %v177
    %239 = vmatprep.subr.mxu0 0.0
    %240 = vmatpush1.msra.mxu0 %v176
    %241 = vmatprep.subr.mxu0 0.0
    %242 = vmatpush1.msra.mxu0 %v175
    %243 = vmatprep.subr.mxu0 0.0
    %244 = vmatpush1.msra.mxu0 %v174
    %245 = vmatprep.subr.mxu0 0.0
    %246 = vmatpush2.msra.mxu0 %v205
    %247 = vmatprep.subr.mxu0 0.0
    %248 = vmatpush2.msra.mxu0 %v204
    %249 = vmatprep.subr.mxu0 0.0
    %250 = vmatpush2.msra.mxu0 %v203
    %251 = vmatprep.subr.mxu0 0.0
    %252 = vmatpush2.msra.mxu0 %v202
    %253 = vmatprep.subr.mxu0 0.0
    %254 = vmatpush2.msra.mxu0 %v201
    %255 = vmatprep.subr.mxu0 0.0
    %256 = vmatpush2.msra.mxu0 %v200
    %257 = vmatprep.subr.mxu0 0.0
    %258 = vmatpush2.msra.mxu0 %v199
    %259 = vmatprep.subr.mxu0 0.0
    %260 = vmatpush2.msra.mxu0 %v198
    %261 = vmatprep.subr.mxu0 0.0
    %262 = vmatpush2.msra.mxu0 %v197
    %263 = vmatprep.subr.mxu0 0.0
    %264 = vmatpush2.msra.mxu0 %v196
    %265 = vmatprep.subr.mxu0 0.0
    %266 = vmatpush2.msra.mxu0 %v195
    %267 = vmatprep.subr.mxu0 0.0
    %268 = vmatpush2.msra.mxu0 %v194
    %269 = vmatprep.subr.mxu0 0.0
    %270 = vmatpush2.msra.mxu0 %v193
    %271 = vmatprep.subr.mxu0 0.0
    %272 = vmatpush2.msra.mxu0 %v192
    %273 = vmatprep.subr.mxu0 0.0
    %274 = vmatpush2.msra.mxu0 %v191
    %275 = vmatprep.subr.mxu0 0.0
    %276 = vmatpush2.msra.mxu0 %v190
    %277 = vmatprep.mubr.f32.mxu0 %v168
    %278 = vmatmul.mubr.f32.gmra.mxu0 %v121
    %v279 = vpop.f32.mrf.mxu0
    %v280 = vadd.f32 %v211, %v279
    %v281 = vpop.f32.mrf.mxu0
    %282 = vmatprep.mubr.f32.mxu0 %v171
    %283 = vmatmul.mubr.f32.gmra.mxu0 %v122
    %v284 = vpop.f32.mrf.mxu0
    %v285 = vadd.f32 %v211, %v284
    %v286 = vpop.f32.mrf.mxu0
    %287 = vdwg.mxu0
    %v288 = vmul.f32 %v280, %v280
    %v289 = vmul.f32 %v285, %v285
    %290 = vadd.xlane.f32.xlu0 %v288
    %v291 = vpop.xlane.xlu0 %290
    %292 = vadd.xlane.f32.xlu0 %v289
    %v293 = vpop.xlane.xlu0 %292
    %v294 = vmax.f32 %v291, 1e-24
    %v295 = vmax.f32 %v293, 1e-24
    %v296 = vrsqrt.pop %v294
    %v297 = vrsqrt.pop %v295
    %v298 = vmul.f32 %v280, %v296
    %v299 = vmul.f32 %v285, %v297
    %v300 = vmax.f32 %v298, 0.0
    %v301 = vmax.f32 %v299, 0.0
    %v302 = vpack.c.bf16 %v301, %v300
    %303 = vmatprep.subr.bf16.mxu0 0
    %304 = vmatpush1.bf16.msra.mxu0 0
    %305 = vmatprep.subr.bf16.mxu0 0
    %306 = vmatpush1.bf16.msra.mxu0 0
    %307 = vmatprep.subr.bf16.mxu0 0
    %308 = vmatpush1.bf16.msra.mxu0 0
    %309 = vmatprep.subr.bf16.mxu0 0
    %310 = vmatpush1.bf16.msra.mxu0 0
    %311 = vmatprep.subr.bf16.mxu0 0
    %312 = vmatpush1.bf16.msra.mxu0 0
    %313 = vmatprep.subr.bf16.mxu0 0
    %314 = vmatpush1.bf16.msra.mxu0 0
    %315 = vmatprep.subr.bf16.mxu0 0
    %316 = vmatpush1.bf16.msra.mxu0 0
    %317 = vmatprep.subr.bf16.mxu0 0
    %318 = vmatpush1.bf16.msra.mxu0 %v302
    %319 = vmatprep.subr.bf16.mxu0 0
    %320 = vmatpush2.bf16.msra.mxu0 0
    %321 = vmatprep.subr.bf16.mxu0 0
    %322 = vmatpush2.bf16.msra.mxu0 0
    %323 = vmatprep.subr.bf16.mxu0 0
    %324 = vmatpush2.bf16.msra.mxu0 0
    %325 = vmatprep.subr.bf16.mxu0 0
    %326 = vmatpush2.bf16.msra.mxu0 0
    %327 = vmatprep.subr.bf16.mxu0 0
    %328 = vmatpush2.bf16.msra.mxu0 0
    %329 = vmatprep.subr.bf16.mxu0 0
    %330 = vmatpush2.bf16.msra.mxu0 0
    %331 = vmatprep.subr.bf16.mxu0 0
    %332 = vmatpush2.bf16.msra.mxu0 0
    %333 = vmatprep.subr.bf16.mxu0 0
    %334 = vmatpush2.bf16.msra.mxu0 0
    %335 = vmatprep.mubr.bf16.mxu0 0
    %336 = vmatmul.mubr.bf16.gmra.mxu0 %v131
    %v337 = vpop.f32.mrf.mxu0
    %v338 = vadd.f32 0.0, %v337
    %v339 = vpop.f32.mrf.mxu0
    %v340 = vpop.f32.mrf.mxu0
    %v341 = vadd.f32 0.0, %v340
    %v342 = vpop.f32.mrf.mxu0
    %343 = vdwg.mxu0
    %v344 = vld [vmem:[#allocation8] sm:$0xff]
    %v345 = vld [vmem:[#allocation8 + $0x8] sm:$0xff]
    %v346 = vld [vmem:[#allocation8 + $0x10] sm:$0xff]
    %v347 = vld [vmem:[#allocation8 + $0x18] sm:$0xff]
    %v348 = vld [vmem:[#allocation8 + $0x20] sm:$0xff]
    %v349 = vld [vmem:[#allocation8 + $0x28] sm:$0xff]
    %v350 = vld [vmem:[#allocation8 + $0x30] sm:$0xff]
    %v351 = vld [vmem:[#allocation8 + $0x38] sm:$0xff]
    %v352 = vld [vmem:[#allocation8 + $0x40] sm:$0xff]
    %v353 = vld [vmem:[#allocation8 + $0x48] sm:$0xff]
    %v354 = vld [vmem:[#allocation8 + $0x50] sm:$0xff]
    %v355 = vld [vmem:[#allocation8 + $0x58] sm:$0xff]
    %v356 = vld [vmem:[#allocation8 + $0x60] sm:$0xff]
    %v357 = vld [vmem:[#allocation8 + $0x68] sm:$0xff]
    %v358 = vld [vmem:[#allocation8 + $0x70] sm:$0xff]
    %v359 = vld [vmem:[#allocation8 + $0x78] sm:$0xff]
    %v360 = vld [vmem:[#allocation8 + $0x80] sm:$0xff]
    %v361 = vld [vmem:[#allocation8 + $0x88] sm:$0xff]
    %v362 = vld [vmem:[#allocation8 + $0x90] sm:$0xff]
    %v363 = vld [vmem:[#allocation8 + $0x98] sm:$0xff]
    %v364 = vld [vmem:[#allocation8 + $0xa0] sm:$0xff]
    %v365 = vld [vmem:[#allocation8 + $0xa8] sm:$0xff]
    %v366 = vld [vmem:[#allocation8 + $0xb0] sm:$0xff]
    %v367 = vld [vmem:[#allocation8 + $0xb8] sm:$0xff]
    %v368 = vld [vmem:[#allocation8 + $0xc0] sm:$0xff]
    %v369 = vld [vmem:[#allocation8 + $0xc8] sm:$0xff]
    %v370 = vld [vmem:[#allocation8 + $0xd0] sm:$0xff]
    %v371 = vld [vmem:[#allocation8 + $0xd8] sm:$0xff]
    %v372 = vld [vmem:[#allocation8 + $0xe0] sm:$0xff]
    %v373 = vld [vmem:[#allocation8 + $0xe8] sm:$0xff]
    %v374 = vld [vmem:[#allocation8 + $0xf0] sm:$0xff]
    %v375 = vld [vmem:[#allocation8 + $0xf8] sm:$0xff]
    %v376 = vld [vmem:[%s5] sm:$0x1]
    %v378 = vlaneseq
    %v379 = vshrl.u32 %v378, 7
    %v380 = vsub.s32 0, %v379
    %v381 = vrot.slane %v376, %v380
    %383 = vmatprep.subr.mxu0 0.0
    %384 = vmatpush1.msra.mxu0 %v359
    %385 = vmatprep.subr.mxu0 0.0
    %386 = vmatpush1.msra.mxu0 %v358
    %387 = vmatprep.subr.mxu0 0.0
    %388 = vmatpush1.msra.mxu0 %v357
    %389 = vmatprep.subr.mxu0 0.0
    %390 = vmatpush1.msra.mxu0 %v356
    %391 = vmatprep.subr.mxu0 0.0
    %392 = vmatpush1.msra.mxu0 %v355
    %393 = vmatprep.subr.mxu0 0.0
    %394 = vmatpush1.msra.mxu0 %v354
    %395 = vmatprep.subr.mxu0 0.0
    %396 = vmatpush1.msra.mxu0 %v353
    %397 = vmatprep.subr.mxu0 0.0
    %398 = vmatpush1.msra.mxu0 %v352
    %399 = vmatprep.subr.mxu0 0.0
    %400 = vmatpush1.msra.mxu0 %v351
    %401 = vmatprep.subr.mxu0 0.0
    %402 = vmatpush1.msra.mxu0 %v350
    %403 = vmatprep.subr.mxu0 0.0
    %404 = vmatpush1.msra.mxu0 %v349
    %405 = vmatprep.subr.mxu0 0.0
    %406 = vmatpush1.msra.mxu0 %v348
    %407 = vmatprep.subr.mxu0 0.0
    %408 = vmatpush1.msra.mxu0 %v347
    %409 = vmatprep.subr.mxu0 0.0
    %410 = vmatpush1.msra.mxu0 %v346
    %411 = vmatprep.subr.mxu0 0.0
    %412 = vmatpush1.msra.mxu0 %v345
    %413 = vmatprep.subr.mxu0 0.0
    %414 = vmatpush1.msra.mxu0 %v344
    %415 = vmatprep.subr.mxu0 0.0
    %416 = vmatpush2.msra.mxu0 %v375
    %417 = vmatprep.subr.mxu0 0.0
    %418 = vmatpush2.msra.mxu0 %v374
    %419 = vmatprep.subr.mxu0 0.0
    %420 = vmatpush2.msra.mxu0 %v373
    %421 = vmatprep.subr.mxu0 0.0
    %422 = vmatpush2.msra.mxu0 %v372
    %423 = vmatprep.subr.mxu0 0.0
    %424 = vmatpush2.msra.mxu0 %v371
    %425 = vmatprep.subr.mxu0 0.0
    %426 = vmatpush2.msra.mxu0 %v370
    %427 = vmatprep.subr.mxu0 0.0
    %428 = vmatpush2.msra.mxu0 %v369
    %429 = vmatprep.subr.mxu0 0.0
    %430 = vmatpush2.msra.mxu0 %v368
    %431 = vmatprep.subr.mxu0 0.0
    %432 = vmatpush2.msra.mxu0 %v367
    %433 = vmatprep.subr.mxu0 0.0
    %434 = vmatpush2.msra.mxu0 %v366
    %435 = vmatprep.subr.mxu0 0.0
    %436 = vmatpush2.msra.mxu0 %v365
    %437 = vmatprep.subr.mxu0 0.0
    %438 = vmatpush2.msra.mxu0 %v364
    %439 = vmatprep.subr.mxu0 0.0
    %440 = vmatpush2.msra.mxu0 %v363
    %441 = vmatprep.subr.mxu0 0.0
    %442 = vmatpush2.msra.mxu0 %v362
    %443 = vmatprep.subr.mxu0 0.0
    %444 = vmatpush2.msra.mxu0 %v361
    %445 = vmatprep.subr.mxu0 0.0
    %446 = vmatpush2.msra.mxu0 %v360
    %447 = vmatprep.mubr.f32.mxu0 %v338
    %448 = vmatmul.mubr.f32.gmra.mxu0 %v300
    %v449 = vpop.f32.mrf.mxu0
    %v450 = vadd.f32 %v381, %v449
    %v451 = vpop.f32.mrf.mxu0
    %452 = vmatprep.mubr.f32.mxu0 %v341
    %453 = vmatmul.mubr.f32.gmra.mxu0 %v301
    %v454 = vpop.f32.mrf.mxu0
    %v455 = vadd.f32 %v381, %v454
    %v456 = vpop.f32.mrf.mxu0
    %457 = vdwg.mxu0
    %v458 = vmul.f32 %v450, %v450
    %v459 = vmul.f32 %v455, %v455
    %460 = vadd.xlane.f32.xlu0 %v458
    %v461 = vpop.xlane.xlu0 %460
    %462 = vadd.xlane.f32.xlu0 %v459
    %v463 = vpop.xlane.xlu0 %462
    %v464 = vmax.f32 %v461, 1e-24
    %v465 = vmax.f32 %v463, 1e-24
    %v466 = vrsqrt.pop %v464
    %v467 = vrsqrt.pop %v465
    %v468 = vmul.f32 %v450, %v466
    %v469 = vmul.f32 %v455, %v467
    %v470 = vmax.f32 %v468, 0.0
    %v471 = vmax.f32 %v469, 0.0
    %v472 = vld [vmem:[#allocation10] sm:$0xff]
    %v473 = vld [vmem:[#allocation10 + $0x8] sm:$0xff]
    %v474 = vld [vmem:[#allocation10 + $0x10] sm:$0xff]
    %v475 = vld [vmem:[#allocation10 + $0x18] sm:$0xff]
    %v476 = vld [vmem:[#allocation10 + $0x20] sm:$0xff]
    %v477 = vld [vmem:[#allocation10 + $0x28] sm:$0xff]
    %v478 = vld [vmem:[#allocation10 + $0x30] sm:$0xff]
    %v479 = vld [vmem:[#allocation10 + $0x38] sm:$0xff]
    %v480 = vld [vmem:[#allocation10 + $0x40] sm:$0xff]
    %v481 = vld [vmem:[#allocation10 + $0x48] sm:$0xff]
    %v482 = vld [vmem:[#allocation10 + $0x50] sm:$0xff]
    %v483 = vld [vmem:[#allocation10 + $0x58] sm:$0xff]
    %v484 = vld [vmem:[#allocation10 + $0x60] sm:$0xff]
    %v485 = vld [vmem:[#allocation10 + $0x68] sm:$0xff]
    %v486 = vld [vmem:[#allocation10 + $0x70] sm:$0xff]
    %v487 = vld [vmem:[#allocation10 + $0x78] sm:$0xff]
    %v488 = vld [vmem:[%s7] sm:$0x1]
    %v490 = vlaneseq
    %v491 = vshrl.u32 %v490, 7
    %v492 = vsub.s32 0, %v491
    %v493 = vrot.slane %v488, %v492
    %495 = vmatprep.subr.mxu0 0.0
    %496 = vmatpush1.msra.mxu0 %v487
    %497 = vmatprep.subr.mxu0 0.0
    %498 = vmatpush1.msra.mxu0 %v486
    %499 = vmatprep.subr.mxu0 0.0
    %500 = vmatpush1.msra.mxu0 %v485
    %501 = vmatprep.subr.mxu0 0.0
    %502 = vmatpush1.msra.mxu0 %v484
    %503 = vmatprep.subr.mxu0 0.0
    %504 = vmatpush1.msra.mxu0 %v483
    %505 = vmatprep.subr.mxu0 0.0
    %506 = vmatpush1.msra.mxu0 %v482
    %507 = vmatprep.subr.mxu0 0.0
    %508 = vmatpush1.msra.mxu0 %v481
    %509 = vmatprep.subr.mxu0 0.0
    %510 = vmatpush1.msra.mxu0 %v480
    %511 = vmatprep.subr.mxu0 0.0
    %512 = vmatpush1.msra.mxu0 %v479
    %513 = vmatprep.subr.mxu0 0.0
    %514 = vmatpush1.msra.mxu0 %v478
    %515 = vmatprep.subr.mxu0 0.0
    %516 = vmatpush1.msra.mxu0 %v477
    %517 = vmatprep.subr.mxu0 0.0
    %518 = vmatpush1.msra.mxu0 %v476
    %519 = vmatprep.subr.mxu0 0.0
    %520 = vmatpush1.msra.mxu0 %v475
    %521 = vmatprep.subr.mxu0 0.0
    %522 = vmatpush1.msra.mxu0 %v474
    %523 = vmatprep.subr.mxu0 0.0
    %524 = vmatpush1.msra.mxu0 %v473
    %525 = vmatprep.subr.mxu0 0.0
    %526 = vmatpush1.msra.mxu0 %v472
    %527 = vmatprep.subr.mxu0 0.0
    %528 = vmatpush2.msra.mxu0 0.0
    %529 = vmatprep.subr.mxu0 0.0
    %530 = vmatpush2.msra.mxu0 0.0
    %531 = vmatprep.subr.mxu0 0.0
    %532 = vmatpush2.msra.mxu0 0.0
    %533 = vmatprep.subr.mxu0 0.0
    %534 = vmatpush2.msra.mxu0 0.0
    %535 = vmatprep.subr.mxu0 0.0
    %536 = vmatpush2.msra.mxu0 0.0
    %537 = vmatprep.subr.mxu0 0.0
    %538 = vmatpush2.msra.mxu0 0.0
    %539 = vmatprep.subr.mxu0 0.0
    %540 = vmatpush2.msra.mxu0 0.0
    %541 = vmatprep.subr.mxu0 0.0
    %542 = vmatpush2.msra.mxu0 0.0
    %543 = vmatprep.subr.mxu0 0.0
    %544 = vmatpush2.msra.mxu0 0.0
    %545 = vmatprep.subr.mxu0 0.0
    %546 = vmatpush2.msra.mxu0 0.0
    %547 = vmatprep.subr.mxu0 0.0
    %548 = vmatpush2.msra.mxu0 0.0
    %549 = vmatprep.subr.mxu0 0.0
    %550 = vmatpush2.msra.mxu0 0.0
    %551 = vmatprep.subr.mxu0 0.0
    %552 = vmatpush2.msra.mxu0 0.0
    %553 = vmatprep.subr.mxu0 0.0
    %554 = vmatpush2.msra.mxu0 0.0
    %555 = vmatprep.subr.mxu0 0.0
    %556 = vmatpush2.msra.mxu0 0.0
    %557 = vmatprep.subr.mxu0 0.0
    %558 = vmatpush2.msra.mxu0 0.0
    %559 = vmatprep.mubr.f32.mxu0 0.0
    %560 = vmatmul.mubr.f32.gmra.mxu0 %v470
    %v561 = vpop.f32.mrf.mxu0
    %v562 = vadd.f32 %v493, %v561
    %v563 = vpop.f32.mrf.mxu0
    %564 = vmatprep.mubr.f32.mxu0 0.0
    %565 = vmatmul.mubr.f32.gmra.mxu0 %v471
    %v566 = vpop.f32.mrf.mxu0
    %v567 = vadd.f32 %v493, %v566
    %v568 = vpop.f32.mrf.mxu0
    %569 = vdwg.mxu0
    %v570 = vld [vmem:[#allocation11] sm:$0xff]
    %v571 = vld [vmem:[#allocation11 + $0x8] sm:$0xff]
    %v572 = vld [vmem:[#allocation11 + $0x10] sm:$0xff]
    %v573 = vld [vmem:[#allocation11 + $0x18] sm:$0xff]
    %v574 = vld [vmem:[#allocation11 + $0x20] sm:$0xff]
    %v575 = vld [vmem:[#allocation11 + $0x28] sm:$0xff]
    %v576 = vld [vmem:[#allocation11 + $0x30] sm:$0xff]
    %v577 = vld [vmem:[#allocation11 + $0x38] sm:$0xff]
    %v578 = vld [vmem:[#allocation11 + $0x40] sm:$0xff]
    %v579 = vld [vmem:[#allocation11 + $0x48] sm:$0xff]
    %v580 = vld [vmem:[#allocation11 + $0x50] sm:$0xff]
    %v581 = vld [vmem:[#allocation11 + $0x58] sm:$0xff]
    %v582 = vld [vmem:[#allocation11 + $0x60] sm:$0xff]
    %v583 = vld [vmem:[#allocation11 + $0x68] sm:$0xff]
    %v584 = vld [vmem:[#allocation11 + $0x70] sm:$0xff]
    %v585 = vld [vmem:[#allocation11 + $0x78] sm:$0xff]
    %v586 = vld [vmem:[%s9] sm:$0x1]
    %v588 = vlaneseq
    %v589 = vshrl.u32 %v588, 7
    %v590 = vsub.s32 0, %v589
    %v591 = vrot.slane %v586, %v590
    %593 = vmatprep.subr.mxu0 0.0
    %594 = vmatpush1.msra.mxu0 %v585
    %595 = vmatprep.subr.mxu0 0.0
    %596 = vmatpush1.msra.mxu0 %v584
    %597 = vmatprep.subr.mxu0 0.0
    %598 = vmatpush1.msra.mxu0 %v583
    %599 = vmatprep.subr.mxu0 0.0
    %600 = vmatpush1.msra.mxu0 %v582
    %601 = vmatprep.subr.mxu0 0.0
    %602 = vmatpush1.msra.mxu0 %v581
    %603 = vmatprep.subr.mxu0 0.0
    %604 = vmatpush1.msra.mxu0 %v580
    %605 = vmatprep.subr.mxu0 0.0
    %606 = vmatpush1.msra.mxu0 %v579
    %607 = vmatprep.subr.mxu0 0.0
    %608 = vmatpush1.msra.mxu0 %v578
    %609 = vmatprep.subr.mxu0 0.0
    %610 = vmatpush1.msra.mxu0 %v577
    %611 = vmatprep.subr.mxu0 0.0
    %612 = vmatpush1.msra.mxu0 %v576
    %613 = vmatprep.subr.mxu0 0.0
    %614 = vmatpush1.msra.mxu0 %v575
    %615 = vmatprep.subr.mxu0 0.0
    %616 = vmatpush1.msra.mxu0 %v574
    %617 = vmatprep.subr.mxu0 0.0
    %618 = vmatpush1.msra.mxu0 %v573
    %619 = vmatprep.subr.mxu0 0.0
    %620 = vmatpush1.msra.mxu0 %v572
    %621 = vmatprep.subr.mxu0 0.0
    %622 = vmatpush1.msra.mxu0 %v571
    %623 = vmatprep.subr.mxu0 0.0
    %624 = vmatpush1.msra.mxu0 %v570
    %625 = vmatprep.subr.mxu0 0.0
    %626 = vmatpush2.msra.mxu0 0.0
    %627 = vmatprep.subr.mxu0 0.0
    %628 = vmatpush2.msra.mxu0 0.0
    %629 = vmatprep.subr.mxu0 0.0
    %630 = vmatpush2.msra.mxu0 0.0
    %631 = vmatprep.subr.mxu0 0.0
    %632 = vmatpush2.msra.mxu0 0.0
    %633 = vmatprep.subr.mxu0 0.0
    %634 = vmatpush2.msra.mxu0 0.0
    %635 = vmatprep.subr.mxu0 0.0
    %636 = vmatpush2.msra.mxu0 0.0
    %637 = vmatprep.subr.mxu0 0.0
    %638 = vmatpush2.msra.mxu0 0.0
    %639 = vmatprep.subr.mxu0 0.0
    %640 = vmatpush2.msra.mxu0 0.0
    %641 = vmatprep.subr.mxu0 0.0
    %642 = vmatpush2.msra.mxu0 0.0
    %643 = vmatprep.subr.mxu0 0.0
    %644 = vmatpush2.msra.mxu0 0.0
    %645 = vmatprep.subr.mxu0 0.0
    %646 = vmatpush2.msra.mxu0 0.0
    %647 = vmatprep.subr.mxu0 0.0
    %648 = vmatpush2.msra.mxu0 0.0
    %649 = vmatprep.subr.mxu0 0.0
    %650 = vmatpush2.msra.mxu0 0.0
    %651 = vmatprep.subr.mxu0 0.0
    %652 = vmatpush2.msra.mxu0 0.0
    %653 = vmatprep.subr.mxu0 0.0
    %654 = vmatpush2.msra.mxu0 0.0
    %655 = vmatprep.subr.mxu0 0.0
    %656 = vmatpush2.msra.mxu0 0.0
    %657 = vmatprep.mubr.f32.mxu0 0.0
    %658 = vmatmul.mubr.f32.gmra.mxu0 %v562
    %v659 = vpop.f32.mrf.mxu0
    %v660 = vadd.f32 %v591, %v659
    %v661 = vpop.f32.mrf.mxu0
    %662 = vmatprep.mubr.f32.mxu0 0.0
    %663 = vmatmul.mubr.f32.gmra.mxu0 %v567
    %v664 = vpop.f32.mrf.mxu0
    %v665 = vadd.f32 %v591, %v664
    %v666 = vpop.f32.mrf.mxu0
    %667 = vdwg.mxu0
    %668 = vst [vmem:[#allocation13] sm:$0xff] %v660
    %669 = vst [vmem:[#allocation13 + $0x8] sm:$0xff] %v665
    // Predicated region
    $region66: #{tpu_custom_call.1} parent=1 // pred_check
      _
    $region67: #{tpu_custom_call.1} parent=1 // pred_check_branch
      %671 = sbr.rel (0) target = $region69
    $region68: #{tpu_custom_call.1} parent=1 // pred_region
      %s673 = ssub.s32 256, 256
      %674 = vsyncadd [#allocation4], %s673
      %s675 = sshll.u32 [#allocation13], 4
      %s676 = int_to_ptr.vmem [resolvable:$true] %s675
      %681 = dma.vmem_to_hbm [thread:$0]  %s676, 256, %s10, [#allocation4], 128, 128, 8
    $region69: #{tpu_custom_call.1} parent=1 // pred_fallthru
      _
    // Predicated region
    $region70: #{tpu_custom_call.1} parent=1 // pred_check
      _
    $region71: #{tpu_custom_call.1} parent=1 // pred_check_branch
      %683 = sbr.rel (0) target = $region73
    $region72: #{tpu_custom_call.1} parent=1 // pred_region
      %684 = dma.done [#allocation4], 256
    $region73: #{tpu_custom_call.1} parent=1 // pred_fallthru
      _
    %685 = vsyncpa [#allocation3], 1
    %686 = vsyncpa [#allocation6], 1
    %687 = vsyncpa [#allocation9], 1
    %688 = vsyncpa [#allocation12], 1
    %689 = vsyncpa [#allocation4], 1

</llo_original>
